<compile_context>
chip_gen: v6e
topology: v6e:2x2x1
jax: 0.10.0
libtpu: 0.0.40
codegen_flags: <defaults>
</compile_context>

<pallas_src>
import functools

import jax
import jax.numpy as jnp
from jax.experimental import pallas as pl
from jax.experimental.pallas import tpu as pltpu


def linear_clamp_kernel(x_ref, w_ref, b_ref, o_ref, *, min_value, max_value):
    # x: (tm, K), w: (K, N) (already transposed in wrapper), b: (1, N)
    acc = jnp.dot(x_ref[...], w_ref[...], preferred_element_type=jnp.float32)
    acc = acc + b_ref[...]
    acc = jnp.maximum(acc, min_value)   # torch.clamp_min  (static literal)
    acc = jnp.minimum(acc, max_value)   # torch.clamp_max  (static literal)
    o_ref[...] = acc.astype(o_ref.dtype)


def linear_clamp(x, w, b, min_value=0.0, max_value=13.0, *, tm_max=512):
    """x: (M, 128) f32, w: (256, 128) f32 (PyTorch layout), b: (256,) f32."""
    M, K = x.shape
    N = w.shape[0]

    # One-time layout prep outside the kernel (constant-folds for static params).
    wt = w.T                 # (K, N) -> MXU-native RHS orientation
    b2 = b.reshape(1, N)     # 2D, lane-dense

    # Row-block size: whole problem if small, else 512-row tiles (pad M up).
    tm = M if M <= tm_max else tm_max
    num_blocks = pl.cdiv(M, tm)
    M_pad = num_blocks * tm
    x_in = x if M_pad == M else jnp.pad(x, ((0, M_pad - M), (0, 0)))

    kernel = functools.partial(
        linear_clamp_kernel,
        min_value=float(min_value),
        max_value=float(max_value),
    )

    itemsize = jnp.dtype(x.dtype).itemsize
    cost = pl.CostEstimate(
        flops=2 * M_pad * K * N,
        transcendentals=0,
        bytes_accessed=(M_pad * K + K * N + N + M_pad * N) * itemsize,
    )

    out = pl.pallas_call(
        kernel,
        out_shape=jax.ShapeDtypeStruct((M_pad, N), x.dtype),
        grid=(num_blocks,),
        in_specs=[
            pl.BlockSpec((tm, K), lambda i: (i, 0)),   # x: tiled over rows
            pl.BlockSpec((K, N), lambda i: (0, 0)),    # w^T: VMEM-resident
            pl.BlockSpec((1, N), lambda i: (0, 0)),    # b: VMEM-resident
        ],
        out_specs=pl.BlockSpec((tm, N), lambda i: (i, 0)),
        cost_estimate=cost,
        compiler_params=pltpu.CompilerParams(
            dimension_semantics=("parallel",),
        ),
    )(x_in, wt, b2)

    return out if M_pad == M else out[:M]


if __name__ == "__main__":
    key = jax.random.PRNGKey(0)
    kx, kw, kb = jax.random.split(key, 3)

    # Shapes implied by the module: x2 = (1, 128), Linear(128 -> 256)
    M, K, N = 1, 128, 256
    x = jax.random.normal(kx, (M, K), dtype=jnp.float32)
    # Deterministic param init (uniform like PyTorch's default Linear init).
    bound = 1.0 / jnp.sqrt(jnp.float32(K))
    w = jax.random.uniform(kw, (N, K), dtype=jnp.float32, minval=-bound, maxval=bound)
    b = jax.random.uniform(kb, (N,), dtype=jnp.float32, minval=-bound, maxval=bound)

    out = linear_clamp(x, w, b, min_value=0, max_value=13)
    out = jax.block_until_ready(out)

    # Reference check in plain JAX
    ref = jnp.clip(x @ w.T + b, 0.0, 13.0)
    assert out.shape == (M, N)
    assert jnp.allclose(out, ref, atol=1e-5, rtol=1e-5), "mismatch vs reference"

    print("KERNEL_OK")
</pallas_src>

<mosaic_0001>
module attributes {stable_mosaic.version = 11 : i64} {
  func.func @linear_clamp_kernel(%arg0: i32, %arg1: memref<1x128xf32, #tpu.memory_space<vmem>>, %arg2: memref<128x256xf32, #tpu.memory_space<vmem>>, %arg3: memref<1x256xf32, #tpu.memory_space<vmem>>, %arg4: memref<1x256xf32, #tpu.memory_space<vmem>>) attributes {dimension_semantics = [#tpu.dimension_semantics<parallel>], iteration_bounds = array<i64: 1>, scalar_prefetch = 0 : i64, scratch_operands = 0 : i64, tpu.core_type = #tpu.core_type<tc>, window_params = [{transform_indices = @transform_0, window_bounds = array<i64: 1, 128>}, {pipeline_mode = #tpu.pipeline_mode<synchronous>, transform_indices = @transform_1, window_bounds = array<i64: 128, 256>}, {pipeline_mode = #tpu.pipeline_mode<synchronous>, transform_indices = @transform_2, window_bounds = array<i64: 1, 256>}, {transform_indices = @transform_3, window_bounds = array<i64: 1, 256>}]} {
    %c0 = arith.constant 0 : index
    %c0_0 = arith.constant 0 : index
    %0 = vector.load %arg1[%c0, %c0_0] : memref<1x128xf32, #tpu.memory_space<vmem>>, vector<1x128xf32>
    %c0_1 = arith.constant 0 : index
    %c0_2 = arith.constant 0 : index
    %1 = vector.load %arg2[%c0_1, %c0_2] : memref<128x256xf32, #tpu.memory_space<vmem>>, vector<128x256xf32>
    %cst = arith.constant dense<0.000000e+00> : vector<1x256xf32>
    %2 = tpu.matmul %0, %1, %cst {dimension_numbers = #tpu.dot_dimension_numbers<[1], [0], [0], [1], [0, 0, 1, 1], [], []>} : vector<1x128xf32>, vector<128x256xf32>, vector<1x256xf32> -> vector<1x256xf32>
    %c0_3 = arith.constant 0 : index
    %c0_4 = arith.constant 0 : index
    %3 = vector.load %arg3[%c0_3, %c0_4] : memref<1x256xf32, #tpu.memory_space<vmem>>, vector<1x256xf32>
    %4 = arith.addf %2, %3 : vector<1x256xf32>
    %cst_5 = arith.constant 0.000000e+00 : f32
    %5 = vector.broadcast %cst_5 : f32 to vector<1x256xf32>
    %6 = arith.maximumf %4, %5 : vector<1x256xf32>
    %cst_6 = arith.constant 1.300000e+01 : f32
    %7 = vector.broadcast %cst_6 : f32 to vector<1x256xf32>
    %8 = arith.minimumf %6, %7 : vector<1x256xf32>
    %c0_7 = arith.constant 0 : index
    %c0_8 = arith.constant 0 : index
    %9 = vector.load %arg4[%c0_7, %c0_8] : memref<1x256xf32, #tpu.memory_space<vmem>>, vector<1x256xf32>
    tpu.vector_store %arg4[%c0_7, %c0_8], %8 {strides = array<i32>} : memref<1x256xf32, #tpu.memory_space<vmem>>, vector<1x256xf32>,
    return
  }
  func.func @transform_0(%arg0: i32) -> (i32, i32) {
    %c0_i32 = arith.constant 0 : i32
    %c0_i32_0 = arith.constant 0 : i32
    return %arg0, %c0_i32 : i32, i32
  }
  func.func @transform_1(%arg0: i32) -> (i32, i32) {
    %c0_i32 = arith.constant 0 : i32
    %c0_i32_0 = arith.constant 0 : i32
    %c0_i32_1 = arith.constant 0 : i32
    return %c0_i32, %c0_i32_0 : i32, i32
  }
  func.func @transform_2(%arg0: i32) -> (i32, i32) {
    %c0_i32 = arith.constant 0 : i32
    %c0_i32_0 = arith.constant 0 : i32
    %c0_i32_1 = arith.constant 0 : i32
    return %c0_i32, %c0_i32_0 : i32, i32
  }
  func.func @transform_3(%arg0: i32) -> (i32, i32) {
    %c0_i32 = arith.constant 0 : i32
    %c0_i32_0 = arith.constant 0 : i32
    return %arg0, %c0_i32 : i32, i32
  }
}

</mosaic_0001>

<llo_original>
// kernel: tpu_custom_call.1
$region0: #{tpu_custom_call.1}
  #allocation0 [shape = 'u32[]', space=smem, size = 0x4, offset = 0x4, fixed_abs, tag = 'smem constant byte address 0x4 - core index']
  #allocation1 [shape = 'u32[144,128]{1,0:T(1,128)}', space=vmem, size = 0x12000, scoped, tag = 'internal scratch']
  %s0 = inlined_call_operand.hbm [shape: f32[1,128], index: 0, kind: input, shape index: {}]
  %s1 = inlined_call_operand.hbm [shape: f32[128,256], index: 1, kind: input, shape index: {}]
  %s2 = inlined_call_operand.vmem [shape: f32[1,256], index: 2, kind: input, shape index: {}]
  %s3 = inlined_call_operand.hbm [shape: f32[1,256], index: 3, kind: output, shape index: {}]
  %s4 = sld [smem:[#allocation0]]
  $region30: #{tpu_custom_call.1} parent=0
    _
  %s6 = ssub.s32 1, %s4
  %s7 = scalar_select 0, %s6, %s4
  $region1: #{tpu_custom_call.1} parent=0
    #allocation2 [shape = 'u8[512]{0}', space=vmem, size = 0x400, scoped, tag = 'input window, operand 0, single buffered']
    #allocation3 [shape = 's32[1]{0}', space=sflag, size = 0x4, scoped, tag = 'scoped memory for tpu_custom_call.1']
    #allocation4 [shape = 's32[1]{0}', space=sflag, size = 0x4, scoped, tag = 'scoped memory for tpu_custom_call.1']
    #allocation5 [shape = 'u8[131072]{0}', space=vmem, size = 0x20000, scoped, tag = 'input window, operand 1, single buffered']
    #allocation6 [shape = 's32[1]{0}', space=sflag, size = 0x4, scoped, tag = 'scoped memory for tpu_custom_call.1']
    #allocation7 [shape = 'u8[1024]{0}', space=vmem, size = 0x400, scoped, tag = 'output window, operand 0, single buffered']
    %8 = vsyncpa [#allocation3], 0
    %9 = vsyncpa [#allocation6], 0
    %10 = vsyncpa [#allocation4], 0
    // Predicated region
    $region2: #{tpu_custom_call.1} parent=1 // pred_check
      _
    $region3: #{tpu_custom_call.1} parent=1 // pred_check_branch
      %12 = sbr.rel (0) target = $region5
    $region4: #{tpu_custom_call.1} parent=1 // pred_region
      %s14 = ssub.s32 16, 16
      %15 = vsyncadd [#allocation3], %s14
      %s17 = sshll.u32 [#allocation2], 4
      %s18 = int_to_ptr.vmem [resolvable:$true] %s17
      %20 = dma.hbm_to_vmem [thread:$0]  %s0, 16, %s18, [#allocation3]
    $region5: #{tpu_custom_call.1} parent=1 // pred_fallthru
      _
    // Predicated region
    $region6: #{tpu_custom_call.1} parent=1 // pred_check
      _
    $region7: #{tpu_custom_call.1} parent=1 // pred_check_branch
      %22 = sbr.rel (0) target = $region9
    $region8: #{tpu_custom_call.1} parent=1 // pred_region
      %s24 = ssub.s32 4096, 4096
      %25 = vsyncadd [#allocation6], %s24
      %s26 = sshll.u32 [#allocation5], 4
      %s27 = int_to_ptr.vmem [resolvable:$true] %s26
      %32 = dma.hbm_to_vmem [thread:$0]  %s1, 4096, %s27, [#allocation6], 256, 256, 16
    $region9: #{tpu_custom_call.1} parent=1 // pred_fallthru
      _
    // Predicated region
    $region10: #{tpu_custom_call.1} parent=1 // pred_check
      _
    $region11: #{tpu_custom_call.1} parent=1 // pred_check_branch
      %34 = sbr.rel (0) target = $region13
    $region12: #{tpu_custom_call.1} parent=1 // pred_region
      _
    $region13: #{tpu_custom_call.1} parent=1 // pred_fallthru
      _
    // Predicated region
    $region14: #{tpu_custom_call.1} parent=1 // pred_check
      _
    $region15: #{tpu_custom_call.1} parent=1 // pred_check_branch
      %36 = sbr.rel (0) target = $region17
    $region16: #{tpu_custom_call.1} parent=1 // pred_region
      %37 = dma.done [#allocation3], 16
    $region17: #{tpu_custom_call.1} parent=1 // pred_fallthru
      _
    // Predicated region
    $region18: #{tpu_custom_call.1} parent=1 // pred_check
      _
    $region19: #{tpu_custom_call.1} parent=1 // pred_check_branch
      %39 = sbr.rel (0) target = $region21
    $region20: #{tpu_custom_call.1} parent=1 // pred_region
      %40 = dma.done [#allocation6], 4096
    $region21: #{tpu_custom_call.1} parent=1 // pred_fallthru
      _
    %v41 = vld [vmem:[#allocation2] sm:$0x1]
    %v42 = vld [vmem:[#allocation5] sm:$0xff]
    %v43 = vld [vmem:[#allocation5 + $0x8] sm:$0xff]
    %v44 = vld [vmem:[#allocation5 + $0x10] sm:$0xff]
    %v45 = vld [vmem:[#allocation5 + $0x18] sm:$0xff]
    %v46 = vld [vmem:[#allocation5 + $0x20] sm:$0xff]
    %v47 = vld [vmem:[#allocation5 + $0x28] sm:$0xff]
    %v48 = vld [vmem:[#allocation5 + $0x30] sm:$0xff]
    %v49 = vld [vmem:[#allocation5 + $0x38] sm:$0xff]
    %v50 = vld [vmem:[#allocation5 + $0x40] sm:$0xff]
    %v51 = vld [vmem:[#allocation5 + $0x48] sm:$0xff]
    %v52 = vld [vmem:[#allocation5 + $0x50] sm:$0xff]
    %v53 = vld [vmem:[#allocation5 + $0x58] sm:$0xff]
    %v54 = vld [vmem:[#allocation5 + $0x60] sm:$0xff]
    %v55 = vld [vmem:[#allocation5 + $0x68] sm:$0xff]
    %v56 = vld [vmem:[#allocation5 + $0x70] sm:$0xff]
    %v57 = vld [vmem:[#allocation5 + $0x78] sm:$0xff]
    %v58 = vld [vmem:[#allocation5 + $0x80] sm:$0xff]
    %v59 = vld [vmem:[#allocation5 + $0x88] sm:$0xff]
    %v60 = vld [vmem:[#allocation5 + $0x90] sm:$0xff]
    %v61 = vld [vmem:[#allocation5 + $0x98] sm:$0xff]
    %v62 = vld [vmem:[#allocation5 + $0xa0] sm:$0xff]
    %v63 = vld [vmem:[#allocation5 + $0xa8] sm:$0xff]
    %v64 = vld [vmem:[#allocation5 + $0xb0] sm:$0xff]
    %v65 = vld [vmem:[#allocation5 + $0xb8] sm:$0xff]
    %v66 = vld [vmem:[#allocation5 + $0xc0] sm:$0xff]
    %v67 = vld [vmem:[#allocation5 + $0xc8] sm:$0xff]
    %v68 = vld [vmem:[#allocation5 + $0xd0] sm:$0xff]
    %v69 = vld [vmem:[#allocation5 + $0xd8] sm:$0xff]
    %v70 = vld [vmem:[#allocation5 + $0xe0] sm:$0xff]
    %v71 = vld [vmem:[#allocation5 + $0xe8] sm:$0xff]
    %v72 = vld [vmem:[#allocation5 + $0xf0] sm:$0xff]
    %v73 = vld [vmem:[#allocation5 + $0xf8] sm:$0xff]
    %v74 = vld [vmem:[%s2] sm:$0x3]
    %v76 = vlaneseq
    %v77 = vshrl.u32 %v76, 7
    %v78 = vsub.s32 0, %v77
    %v79 = vrot.slane %v74, %v78
    %v80 = vlaneseq
    %v81 = vshrl.u32 %v80, 7
    %v82 = vsub.s32 1, %v81
    %v83 = vrot.slane %v74, %v82
    %86 = vmatprep.subr.mxu0 %v73
    %87 = vmatpush1.msra.mxu0 %v72
    %88 = vmatprep.subr.mxu0 %v71
    %89 = vmatpush1.msra.mxu0 %v70
    %90 = vmatprep.subr.mxu0 %v69
    %91 = vmatpush1.msra.mxu0 %v68
    %92 = vmatprep.subr.mxu0 %v67
    %93 = vmatpush1.msra.mxu0 %v66
    %94 = vmatprep.subr.mxu0 %v65
    %95 = vmatpush1.msra.mxu0 %v64
    %96 = vmatprep.subr.mxu0 %v63
    %97 = vmatpush1.msra.mxu0 %v62
    %98 = vmatprep.subr.mxu0 %v61
    %99 = vmatpush1.msra.mxu0 %v60
    %100 = vmatprep.subr.mxu0 %v59
    %101 = vmatpush1.msra.mxu0 %v58
    %102 = vmatprep.subr.mxu0 %v57
    %103 = vmatpush1.msra.mxu0 %v56
    %104 = vmatprep.subr.mxu0 %v55
    %105 = vmatpush1.msra.mxu0 %v54
    %106 = vmatprep.subr.mxu0 %v53
    %107 = vmatpush1.msra.mxu0 %v52
    %108 = vmatprep.subr.mxu0 %v51
    %109 = vmatpush1.msra.mxu0 %v50
    %110 = vmatprep.subr.mxu0 %v49
    %111 = vmatpush1.msra.mxu0 %v48
    %112 = vmatprep.subr.mxu0 %v47
    %113 = vmatpush1.msra.mxu0 %v46
    %114 = vmatprep.subr.mxu0 %v45
    %115 = vmatpush1.msra.mxu0 %v44
    %116 = vmatprep.subr.mxu0 %v43
    %117 = vmatpush1.msra.mxu0 %v42
    %118 = vmatprep.subr.mxu0 0.0
    %119 = vmatpush2.msra.mxu0 0.0
    %120 = vmatprep.subr.mxu0 0.0
    %121 = vmatpush2.msra.mxu0 0.0
    %122 = vmatprep.subr.mxu0 0.0
    %123 = vmatpush2.msra.mxu0 0.0
    %124 = vmatprep.subr.mxu0 0.0
    %125 = vmatpush2.msra.mxu0 0.0
    %126 = vmatprep.subr.mxu0 0.0
    %127 = vmatpush2.msra.mxu0 0.0
    %128 = vmatprep.subr.mxu0 0.0
    %129 = vmatpush2.msra.mxu0 0.0
    %130 = vmatprep.subr.mxu0 0.0
    %131 = vmatpush2.msra.mxu0 0.0
    %132 = vmatprep.subr.mxu0 0.0
    %133 = vmatpush2.msra.mxu0 0.0
    %134 = vmatprep.subr.mxu0 0.0
    %135 = vmatpush2.msra.mxu0 0.0
    %136 = vmatprep.subr.mxu0 0.0
    %137 = vmatpush2.msra.mxu0 0.0
    %138 = vmatprep.subr.mxu0 0.0
    %139 = vmatpush2.msra.mxu0 0.0
    %140 = vmatprep.subr.mxu0 0.0
    %141 = vmatpush2.msra.mxu0 0.0
    %142 = vmatprep.subr.mxu0 0.0
    %143 = vmatpush2.msra.mxu0 0.0
    %144 = vmatprep.subr.mxu0 0.0
    %145 = vmatpush2.msra.mxu0 0.0
    %146 = vmatprep.subr.mxu0 0.0
    %147 = vmatpush2.msra.mxu0 0.0
    %148 = vmatprep.subr.mxu0 0.0
    %149 = vmatpush2.msra.mxu0 0.0
    %150 = vmatprep.mubr.f32.mxu0 0.0
    %151 = vmatmul.mubr.f32.gmra.mxu0 %v41
    %v152 = vpop.f32.mrf.mxu0
    %v153 = vadd.f32 %v79, %v152
    %v154 = vpop.f32.mrf.mxu0
    %v155 = vadd.f32 %v83, %v154
    %156 = vdwg.mxu0
    %v157 = vmax.f32 %v153, 0.0
    %v158 = vmax.f32 %v155, 0.0
    %v159 = vmin.f32 %v157, 13.0
    %v160 = vmin.f32 %v158, 13.0
    %v163 = vcombine.low %v159, %v160
    %v165 = vunpack.c.l.s4 1966171168
    %v166 = vunpack.c.0.s8 %v165
    %v167 = vlaneseq
    %v168 = vshrl.u32 %v167, 7
    %v169 = vsub.s32 %v166, %v168
    %v170 = vrot.slane %v163, %v169
    %v172 = vunpack.c.l.s4 1966171168
    %v173 = vunpack.c.0.s8 %v172
    %v174 = vlaneseq
    %v175 = vshrl.u32 %v174, 7
    %v176 = vsub.s32 %v173, %v175
    %v177 = vrot.slane %v170, %v176
    %v179 = vlaneseq
    %vm180 = vcmp.ge.s32.totalorder %v179, 0
    %vm181 = vcmp.lt.s32.totalorder %v179, 256
    %vm182 = vmand %vm180, %vm181
    %183 = vst.msk [vmem:[#allocation7] sm:$0x3] %vm182, %v177
    // Predicated region
    $region22: #{tpu_custom_call.1} parent=1 // pred_check
      _
    $region23: #{tpu_custom_call.1} parent=1 // pred_check_branch
      %185 = sbr.rel (0) target = $region25
    $region24: #{tpu_custom_call.1} parent=1 // pred_region
      %s187 = ssub.s32 32, 32
      %188 = vsyncadd [#allocation4], %s187
      %s190 = sshll.u32 [#allocation7], 4
      %s191 = int_to_ptr.vmem [resolvable:$true] %s190
      %193 = dma.vmem_to_hbm [thread:$0]  %s191, 32, %s3, [#allocation4]
    $region25: #{tpu_custom_call.1} parent=1 // pred_fallthru
      _
    // Predicated region
    $region26: #{tpu_custom_call.1} parent=1 // pred_check
      _
    $region27: #{tpu_custom_call.1} parent=1 // pred_check_branch
      %195 = sbr.rel (0) target = $region29
    $region28: #{tpu_custom_call.1} parent=1 // pred_region
      %196 = dma.done [#allocation4], 32
    $region29: #{tpu_custom_call.1} parent=1 // pred_fallthru
      _
    %197 = vsyncpa [#allocation3], 1
    %198 = vsyncpa [#allocation6], 1
    %199 = vsyncpa [#allocation4], 1

</llo_original>
